<compile_context>
chip_gen: v5e
topology: v5e:2x2
jax: 0.10.0
libtpu: 0.0.40
codegen_flags: <defaults>
</compile_context>

<pallas_src>
import functools
import math

import jax
import jax.numpy as jnp
from jax import lax
from jax.experimental import pallas as pl
from jax.experimental.pallas import tpu as pltpu

_LANES = 1024                    # lane-dense slab width (multiple of 128)
_SUBLANES = 8
_PAD_UNIT = _SUBLANES * 128      # one (8,128) f32 tile = 1024 elements
_TWO_PI = float(2.0 * math.pi)   # Python float -> jaxpr literal (no captured const)
_MAX_TILE_ROWS = 512             # 512 x 1024 x 4B = 2 MiB per operand per buffer

_SALT_STACK = 0x51AC             # per-tensor PRNG salt (streams stay independent
_SALT_RFV = 0x0C0FFEE            # even if the two int32 seeds ever collide)

_COMPILER_PARAMS = pltpu.CompilerParams(
    dimension_semantics=("parallel",),
    vmem_limit_bytes=32 * 1024 * 1024,   # headroom above v5e's 16 MiB default
)


# ----------------------------------------------------------------------------
# In-kernel RNG helpers (TPU hardware PRNG)
# ----------------------------------------------------------------------------
def _random_f32_1_to_2(shape):
    """Uniform float32 in [1, 2): 23 random mantissa bits OR'd onto exponent of 1.0."""
    bits = pltpu.prng_random_bits(shape)
    if bits.dtype != jnp.uint32:                 # older JAX returns int32 raw bits
        bits = lax.bitcast_convert_type(bits, jnp.uint32)
    mant = (bits >> 9) | 0x3F800000              # logical shift on uint32
    return lax.bitcast_convert_type(mant, jnp.float32)


def _standard_normal(shape):
    """N(0,1) samples from the stateful TPU PRNG (dual-output Box-Muller).

    The lane axis is split in half: one (u1, u2) pair yields both r*cos(theta) and
    r*sin(theta), halving the EUP (log/sqrt/sin/cos) work per output element.
    """
    rows, lanes = shape
    half = lanes // 2
    if half >= 128 and half % 128 == 0 and 2 * half == lanes:
        u_open = 2.0 - _random_f32_1_to_2((rows, half))              # (0, 1]
        theta = (_random_f32_1_to_2((rows, half)) - 1.0) * _TWO_PI   # [0, 2*pi)
        r = jnp.sqrt(-2.0 * jnp.log(u_open))
        return jnp.concatenate([r * jnp.cos(theta), r * jnp.sin(theta)], axis=-1)
    # Fallback for narrow tiles: single-output Box-Muller.
    u_open = 2.0 - _random_f32_1_to_2(shape)
    theta = (_random_f32_1_to_2(shape) - 1.0) * _TWO_PI
    return jnp.sqrt(-2.0 * jnp.log(u_open)) * jnp.cos(theta)


# ----------------------------------------------------------------------------
# Kernels
# ----------------------------------------------------------------------------
def _noise_kernel_prng(seed_ref, x_ref, o_ref, *, a_var, b_var, salt):
    """o = x + sqrt(max(a_var*x + b_var, 0)) * z, z ~ N(0,1) drawn in-kernel.

    a_var/b_var already include the per-tensor scale (a*s^2, b*s^2), so
    sqrt(var) == scale * sigma(x) with no extra per-element multiply.
    """
    # Independent stream per (tensor, grid block); safe under "parallel"/megacore.
    pltpu.prng_seed(seed_ref[0], salt, pl.program_id(0))
    x = x_ref[...]
    z = _standard_normal(x.shape)
    sigma = jnp.sqrt(jnp.maximum(a_var * x + b_var, 0.0))
    o_ref[...] = (x + sigma * z).astype(o_ref.dtype)


def _noise_kernel_hostrng(x_ref, z_ref, o_ref, *, a_var, b_var):
    """Same math, but the N(0,1) noise slab is supplied as a second input."""
    x = x_ref[...]
    sigma = jnp.sqrt(jnp.maximum(a_var * x + b_var, 0.0))
    o_ref[...] = (x + sigma * z_ref[...]).astype(o_ref.dtype)


# ----------------------------------------------------------------------------
# Wrappers
# ----------------------------------------------------------------------------
def _slab_shape(x):
    padded = pl.cdiv(x.size, _PAD_UNIT) * _PAD_UNIT
    return (padded // _LANES, _LANES)


def _to_slab(x):
    """View/pad x as a lane-dense (rows, 1024) slab. Zero-copy when aligned."""
    total = x.size
    padded = pl.cdiv(total, _PAD_UNIT) * _PAD_UNIT
    flat = x.reshape(-1)
    if padded != total:
        # TODO(synk): ragged sizes pay one extra HBM pad copy + output slice; the
        # usual mesoscope shapes (multiples of 1024 elements) hit the zero-copy path.
        flat = jnp.pad(flat, (0, padded - total))
    return flat.reshape(padded // _LANES, _LANES), total


def _from_slab(out, total, orig_shape):
    out_flat = out.reshape(-1)
    if out_flat.shape[0] != total:
        out_flat = out_flat[:total]
    return out_flat.reshape(orig_shape)


def _pick_tile_rows(rows, max_tile_rows=_MAX_TILE_ROWS):
    tile_rows = min(max_tile_rows, rows)
    if pl.cdiv(rows, tile_rows) == 1 and rows >= 2 * _SUBLANES:
        # Keep the grid >= 2 steps so a megacore (v7x) can split it across both TCs.
        tile_rows = ((rows + 1) // 2 + _SUBLANES - 1) // _SUBLANES * _SUBLANES
    return tile_rows


def _apply_noise_prng(x, seed, *, a_var, b_var, salt):
    slab, total = _to_slab(x)
    rows = slab.shape[0]
    tile_rows = _pick_tile_rows(rows)
    kernel = functools.partial(_noise_kernel_prng, a_var=float(a_var),
                               b_var=float(b_var), salt=int(salt))
    out = pl.pallas_call(
        kernel,
        out_shape=jax.ShapeDtypeStruct(slab.shape, x.dtype),
        grid_spec=pltpu.PrefetchScalarGridSpec(
            num_scalar_prefetch=1,           # int32 seed -> SMEM
            grid=(pl.cdiv(rows, tile_rows),),
            in_specs=[pl.BlockSpec((tile_rows, _LANES), lambda i, s: (i, 0))],
            out_specs=pl.BlockSpec((tile_rows, _LANES), lambda i, s: (i, 0)),
        ),
        compiler_params=_COMPILER_PARAMS,
    )(seed, slab)
    return _from_slab(out, total, x.shape)


def _apply_noise_hostrng(x, z_slab, *, a_var, b_var):
    slab, total = _to_slab(x)
    rows = slab.shape[0]
    tile_rows = _pick_tile_rows(rows)
    kernel = functools.partial(_noise_kernel_hostrng, a_var=float(a_var),
                               b_var=float(b_var))
    out = pl.pallas_call(
        kernel,
        out_shape=jax.ShapeDtypeStruct(slab.shape, x.dtype),
        grid=(pl.cdiv(rows, tile_rows),),
        in_specs=[pl.BlockSpec((tile_rows, _LANES), lambda i: (i, 0)),
                  pl.BlockSpec((tile_rows, _LANES), lambda i: (i, 0))],
        out_specs=pl.BlockSpec((tile_rows, _LANES), lambda i: (i, 0)),
        compiler_params=_COMPILER_PARAMS,
    )(slab, z_slab)
    return _from_slab(out, total, x.shape)


_PRNG_PROBE_RESULT = None


def _inkernel_prng_ok():
    """One-time probe: does the in-kernel TPU PRNG path compile/run on this backend
    (interpret mode may lack prng primitives), is it deterministic, and does it
    produce ~N(0,1) noise?  Otherwise fall back to host-side jax.random noise."""
    global _PRNG_PROBE_RESULT
    if _PRNG_PROBE_RESULT is not None:
        return _PRNG_PROBE_RESULT
    try:
        x = jnp.zeros((2 * _SUBLANES, _LANES), jnp.float32)
        seed = jnp.array([1234], jnp.int32)
        # a_var=0, b_var=1, x=0  ->  output is exactly the generated z.
        f = jax.jit(functools.partial(_apply_noise_prng, a_var=0.0, b_var=1.0, salt=7))
        z1 = jax.block_until_ready(f(x, seed))
        z2 = jax.block_until_ready(f(x, seed))
        ok = bool(jnp.array_equal(z1, z2))
        ok = ok and bool(jnp.all(jnp.isfinite(z1)))
        mean = float(jnp.mean(z1))
        std = float(jnp.std(z1))
        ok = ok and abs(mean) < 0.1 and 0.8 < std < 1.2
        _PRNG_PROBE_RESULT = ok
    except Exception:
        _PRNG_PROBE_RESULT = False
    return _PRNG_PROBE_RESULT


class PoissonGaussianNoiseModelPallas:
    """JAX/Pallas port of PoissonGaussianNoiseModel.forward (returns new arrays)."""

    def __init__(self, config: dict):
        self.num_views = config["num_lf_views"]
        self.a_mean = float(config.get("A_MEAN"))
        self.b_mean = float(config.get("B_MEAN"))
        self.recip_sqrt_num_views = 1.0 / math.sqrt(float(self.num_views))

        a, b = self.a_mean, self.b_mean
        s2 = self.recip_sqrt_num_views ** 2          # fold scale into the variance
        self.use_inkernel_prng = _inkernel_prng_ok()

        if self.use_inkernel_prng:
            @jax.jit
            def _fwd(stack, rfv, seeds):
                stack_out = _apply_noise_prng(stack, seeds[0:1],
                                              a_var=a, b_var=b, salt=_SALT_STACK)
                rfv_out = _apply_noise_prng(rfv, seeds[1:2],
                                            a_var=a * s2, b_var=b * s2,
                                            salt=_SALT_RFV)
                return stack_out, rfv_out

            def _call(stack, rfv, key):
                seeds = jax.random.randint(key, (2,), 0, jnp.iinfo(jnp.int32).max,
                                           dtype=jnp.int32)
                return _fwd(stack, rfv, seeds)
        else:
            # TODO(synk): fallback path reads one extra N(0,1) slab from HBM;
            # only used where the TPU PRNG primitives are unavailable.
            @jax.jit
            def _fwd(stack, rfv, key):
                ks, kr = jax.random.split(key)
                z_s = jax.random.normal(ks, _slab_shape(stack), jnp.float32)
                z_r = jax.random.normal(kr, _slab_shape(rfv), jnp.float32)
                stack_out = _apply_noise_hostrng(stack, z_s, a_var=a, b_var=b)
                rfv_out = _apply_noise_hostrng(rfv, z_r, a_var=a * s2, b_var=b * s2)
                return stack_out, rfv_out

            def _call(stack, rfv, key):
                return _fwd(stack, rfv, key)

        self._call = _call

    def __call__(self, stack, rfv, key):
        # NOTE: noise is statistically N(0,1) but not bit-identical to torch.randn.
        return self._call(stack, rfv, key)


if __name__ == "__main__":
    config = {"num_lf_views": 4, "A_MEAN": 0.01, "B_MEAN": 1e-4}
    model = PoissonGaussianNoiseModelPallas(config)

    key = jax.random.PRNGKey(0)
    k_stack, k_rfv, k_noise = jax.random.split(key, 3)

    # stack: (B, num_lf_views, H, W); rfv: (B, depth, H, W), normalized to [0, 1].
    stack = jax.random.uniform(k_stack, (2, 4, 16, 16), dtype=jnp.float32)
    rfv = jax.random.uniform(k_rfv, (2, 8, 16, 16), dtype=jnp.float32)

    stack_out, rfv_out = model(stack, rfv, k_noise)
    jax.block_until_ready((stack_out, rfv_out))

    assert stack_out.shape == stack.shape and stack_out.dtype == stack.dtype
    assert rfv_out.shape == rfv.shape and rfv_out.dtype == rfv.dtype

    # Determinism: same key -> identical draws.
    stack_out2, rfv_out2 = model(stack, rfv, k_noise)
    jax.block_until_ready((stack_out2, rfv_out2))
    assert jnp.array_equal(stack_out, stack_out2)
    assert jnp.array_equal(rfv_out, rfv_out2)

    # Statistical check: implied noise z = (out - x) / (sigma(x) * scale) ~ N(0,1).
    a, b = config["A_MEAN"], config["B_MEAN"]
    sigma_stack = jnp.sqrt(jnp.maximum(a * stack + b, 0.0))
    sigma_rfv = jnp.sqrt(jnp.maximum(a * rfv + b, 0.0)) * model.recip_sqrt_num_views
    z_stack = (stack_out - stack) / sigma_stack
    z_rfv = (rfv_out - rfv) / sigma_rfv
    for z in (z_stack, z_rfv):
        assert bool(jnp.all(jnp.isfinite(z)))
        assert abs(float(jnp.mean(z))) < 0.2, float(jnp.mean(z))
        assert 0.8 < float(jnp.std(z)) < 1.2, float(jnp.std(z))

    # The two tensors use independent noise streams.
    n = min(z_stack.size, z_rfv.size)
    corr = jnp.corrcoef(z_stack.reshape(-1)[:n], z_rfv.reshape(-1)[:n])[0, 1]
    assert abs(float(corr)) < 0.3, float(corr)

    # Ragged-shape path: flattened size not a multiple of 8*128 exercises pad/slice.
    x_odd = jax.random.uniform(jax.random.PRNGKey(3), (1, 3, 13, 7), dtype=jnp.float32)
    odd_out, _ = model(x_odd, x_odd, jax.random.PRNGKey(4))
    jax.block_until_ready(odd_out)
    assert odd_out.shape == x_odd.shape
    assert bool(jnp.all(jnp.isfinite(odd_out)))

    print("KERNEL_OK")
</pallas_src>

<mosaic_0001>
module attributes {stable_mosaic.version = 11 : i64} {
  func.func @_noise_kernel_prng(%arg0: i32, %arg1: memref<1xi32, #tpu.memory_space<smem>>, %arg2: memref<8x1024xf32, #tpu.memory_space<vmem>>, %arg3: memref<8x1024xf32, #tpu.memory_space<vmem>>) attributes {dimension_semantics = [#tpu.dimension_semantics<parallel>], iteration_bounds = array<i64: 2>, scalar_prefetch = 1 : i64, scratch_operands = 0 : i64, tpu.core_type = #tpu.core_type<tc>, window_params = [{transform_indices = @transform_0, window_bounds = array<i64: 8, 1024>}, {transform_indices = @transform_1, window_bounds = array<i64: 8, 1024>}]} {
    %c0 = arith.constant 0 : index
    %0 = memref.load %arg1[%c0] : memref<1xi32, #tpu.memory_space<smem>>
    %c7_i32 = arith.constant 7 : i32
    "tpu.prng_set_seed_32"(%0, %c7_i32, %arg0) : (i32, i32, i32) -> ()
    %c0_0 = arith.constant 0 : index
    %c0_1 = arith.constant 0 : index
    %1 = vector.load %arg2[%c0_0, %c0_1] : memref<8x1024xf32, #tpu.memory_space<vmem>>, vector<8x1024xf32>
    %2 = "tpu.prng_random_bits"() : () -> vector<8x512xi32>
    %3 = tpu.bitcast %2 : vector<8x512xi32> -> vector<8x512xi32>
    %c9_i32 = arith.constant 9 : i32
    %4 = vector.broadcast %c9_i32 : i32 to vector<8x512xi32>
    %5 = arith.shrui %3, %4 : vector<8x512xi32>
    %c1065353216_i32 = arith.constant 1065353216 : i32
    %6 = vector.broadcast %c1065353216_i32 : i32 to vector<8x512xi32>
    %7 = arith.ori %5, %6 : vector<8x512xi32>
    %8 = tpu.bitcast %7 : vector<8x512xi32> -> vector<8x512xf32>
    %cst = arith.constant 2.000000e+00 : f32
    %9 = vector.broadcast %cst : f32 to vector<8x512xf32>
    %10 = arith.subf %9, %8 : vector<8x512xf32>
    %11 = "tpu.prng_random_bits"() : () -> vector<8x512xi32>
    %12 = tpu.bitcast %11 : vector<8x512xi32> -> vector<8x512xi32>
    %c9_i32_2 = arith.constant 9 : i32
    %13 = vector.broadcast %c9_i32_2 : i32 to vector<8x512xi32>
    %14 = arith.shrui %12, %13 : vector<8x512xi32>
    %c1065353216_i32_3 = arith.constant 1065353216 : i32
    %15 = vector.broadcast %c1065353216_i32_3 : i32 to vector<8x512xi32>
    %16 = arith.ori %14, %15 : vector<8x512xi32>
    %17 = tpu.bitcast %16 : vector<8x512xi32> -> vector<8x512xf32>
    %cst_4 = arith.constant 1.000000e+00 : f32
    %18 = vector.broadcast %cst_4 : f32 to vector<8x512xf32>
    %19 = arith.subf %17, %18 : vector<8x512xf32>
    %cst_5 = arith.constant 6.28318548 : f32
    %20 = vector.broadcast %cst_5 : f32 to vector<8x512xf32>
    %21 = arith.mulf %19, %20 : vector<8x512xf32>
    %22 = math.log %10 : vector<8x512xf32>
    %cst_6 = arith.constant -2.000000e+00 : f32
    %23 = vector.broadcast %cst_6 : f32 to vector<8x512xf32>
    %24 = arith.mulf %23, %22 : vector<8x512xf32>
    %25 = math.sqrt %24 : vector<8x512xf32>
    %26 = math.cos %21 : vector<8x512xf32>
    %27 = arith.mulf %25, %26 : vector<8x512xf32>
    %28 = math.sin %21 : vector<8x512xf32>
    %29 = arith.mulf %25, %28 : vector<8x512xf32>
    %30 = tpu.concatenate %27, %29 in 1 : vector<8x512xf32>, vector<8x512xf32> -> vector<8x1024xf32>
    %cst_7 = arith.constant 0.000000e+00 : f32
    %31 = vector.broadcast %cst_7 : f32 to vector<8x1024xf32>
    %32 = arith.mulf %31, %1 : vector<8x1024xf32>
    %cst_8 = arith.constant 1.000000e+00 : f32
    %33 = vector.broadcast %cst_8 : f32 to vector<8x1024xf32>
    %34 = arith.addf %32, %33 : vector<8x1024xf32>
    %cst_9 = arith.constant 0.000000e+00 : f32
    %35 = vector.broadcast %cst_9 : f32 to vector<8x1024xf32>
    %36 = arith.maximumf %34, %35 : vector<8x1024xf32>
    %37 = math.sqrt %36 : vector<8x1024xf32>
    %38 = arith.mulf %37, %30 : vector<8x1024xf32>
    %39 = arith.addf %1, %38 : vector<8x1024xf32>
    %c0_10 = arith.constant 0 : index
    %c0_11 = arith.constant 0 : index
    %40 = vector.load %arg3[%c0_10, %c0_11] : memref<8x1024xf32, #tpu.memory_space<vmem>>, vector<8x1024xf32>
    tpu.vector_store %arg3[%c0_10, %c0_11], %39 {strides = array<i32>} : memref<8x1024xf32, #tpu.memory_space<vmem>>, vector<8x1024xf32>,
    return
  }
  func.func @transform_0(%arg0: i32, %arg1: memref<1xi32, #tpu.memory_space<smem>>) -> (i32, i32) {
    %c0_i32 = arith.constant 0 : i32
    %c0_i32_0 = arith.constant 0 : i32
    return %arg0, %c0_i32 : i32, i32
  }
  func.func @transform_1(%arg0: i32, %arg1: memref<1xi32, #tpu.memory_space<smem>>) -> (i32, i32) {
    %c0_i32 = arith.constant 0 : i32
    %c0_i32_0 = arith.constant 0 : i32
    return %arg0, %c0_i32 : i32, i32
  }
}

module attributes {stable_mosaic.version = 11 : i64} {
  func.func @_noise_kernel_hostrng(%arg0: i32, %arg1: memref<4x1024xf32, #tpu.memory_space<vmem>>, %arg2: memref<4x1024xf32, #tpu.memory_space<vmem>>, %arg3: memref<4x1024xf32, #tpu.memory_space<vmem>>) attributes {dimension_semantics = [#tpu.dimension_semantics<parallel>], iteration_bounds = array<i64: 1>, scalar_prefetch = 0 : i64, scratch_operands = 0 : i64, tpu.core_type = #tpu.core_type<tc>, window_params = [{transform_indices = @transform_0, window_bounds = array<i64: 4, 1024>}, {transform_indices = @transform_1, window_bounds = array<i64: 4, 1024>}, {transform_indices = @transform_2, window_bounds = array<i64: 4, 1024>}]} {
    %c0 = arith.constant 0 : index
    %c0_0 = arith.constant 0 : index
    %0 = vector.load %arg1[%c0, %c0_0] : memref<4x1024xf32, #tpu.memory_space<vmem>>, vector<4x1024xf32>
    %cst = arith.constant 2.500000e-03 : f32
    %1 = vector.broadcast %cst : f32 to vector<4x1024xf32>
    %2 = arith.mulf %1, %0 : vector<4x1024xf32>
    %cst_1 = arith.constant 2.500000e-05 : f32
    %3 = vector.broadcast %cst_1 : f32 to vector<4x1024xf32>
    %4 = arith.addf %2, %3 : vector<4x1024xf32>
    %cst_2 = arith.constant 0.000000e+00 : f32
    %5 = vector.broadcast %cst_2 : f32 to vector<4x1024xf32>
    %6 = arith.maximumf %4, %5 : vector<4x1024xf32>
    %7 = math.sqrt %6 : vector<4x1024xf32>
    %c0_3 = arith.constant 0 : index
    %c0_4 = arith.constant 0 : index
    %8 = vector.load %arg2[%c0_3, %c0_4] : memref<4x1024xf32, #tpu.memory_space<vmem>>, vector<4x1024xf32>
    %9 = arith.mulf %7, %8 : vector<4x1024xf32>
    %10 = arith.addf %0, %9 : vector<4x1024xf32>
    %c0_5 = arith.constant 0 : index
    %c0_6 = arith.constant 0 : index
    %11 = vector.load %arg3[%c0_5, %c0_6] : memref<4x1024xf32, #tpu.memory_space<vmem>>, vector<4x1024xf32>
    tpu.vector_store %arg3[%c0_5, %c0_6], %10 {strides = array<i32>} : memref<4x1024xf32, #tpu.memory_space<vmem>>, vector<4x1024xf32>,
    return
  }
  func.func @transform_0(%arg0: i32) -> (i32, i32) {
    %c0_i32 = arith.constant 0 : i32
    %c0_i32_0 = arith.constant 0 : i32
    return %arg0, %c0_i32 : i32, i32
  }
  func.func @transform_1(%arg0: i32) -> (i32, i32) {
    %c0_i32 = arith.constant 0 : i32
    %c0_i32_0 = arith.constant 0 : i32
    return %arg0, %c0_i32 : i32, i32
  }
  func.func @transform_2(%arg0: i32) -> (i32, i32) {
    %c0_i32 = arith.constant 0 : i32
    %c0_i32_0 = arith.constant 0 : i32
    return %arg0, %c0_i32 : i32, i32
  }
}

module attributes {stable_mosaic.version = 11 : i64} {
  func.func @_noise_kernel_hostrng(%arg0: i32, %arg1: memref<2x1024xf32, #tpu.memory_space<vmem>>, %arg2: memref<2x1024xf32, #tpu.memory_space<vmem>>, %arg3: memref<2x1024xf32, #tpu.memory_space<vmem>>) attributes {dimension_semantics = [#tpu.dimension_semantics<parallel>], iteration_bounds = array<i64: 1>, scalar_prefetch = 0 : i64, scratch_operands = 0 : i64, tpu.core_type = #tpu.core_type<tc>, window_params = [{transform_indices = @transform_0, window_bounds = array<i64: 2, 1024>}, {transform_indices = @transform_1, window_bounds = array<i64: 2, 1024>}, {transform_indices = @transform_2, window_bounds = array<i64: 2, 1024>}]} {
    %c0 = arith.constant 0 : index
    %c0_0 = arith.constant 0 : index
    %0 = vector.load %arg1[%c0, %c0_0] : memref<2x1024xf32, #tpu.memory_space<vmem>>, vector<2x1024xf32>
    %cst = arith.constant 0.00999999977 : f32
    %1 = vector.broadcast %cst : f32 to vector<2x1024xf32>
    %2 = arith.mulf %1, %0 : vector<2x1024xf32>
    %cst_1 = arith.constant 9.99999974E-5 : f32
    %3 = vector.broadcast %cst_1 : f32 to vector<2x1024xf32>
    %4 = arith.addf %2, %3 : vector<2x1024xf32>
    %cst_2 = arith.constant 0.000000e+00 : f32
    %5 = vector.broadcast %cst_2 : f32 to vector<2x1024xf32>
    %6 = arith.maximumf %4, %5 : vector<2x1024xf32>
    %7 = math.sqrt %6 : vector<2x1024xf32>
    %c0_3 = arith.constant 0 : index
    %c0_4 = arith.constant 0 : index
    %8 = vector.load %arg2[%c0_3, %c0_4] : memref<2x1024xf32, #tpu.memory_space<vmem>>, vector<2x1024xf32>
    %9 = arith.mulf %7, %8 : vector<2x1024xf32>
    %10 = arith.addf %0, %9 : vector<2x1024xf32>
    %c0_5 = arith.constant 0 : index
    %c0_6 = arith.constant 0 : index
    %11 = vector.load %arg3[%c0_5, %c0_6] : memref<2x1024xf32, #tpu.memory_space<vmem>>, vector<2x1024xf32>
    tpu.vector_store %arg3[%c0_5, %c0_6], %10 {strides = array<i32>} : memref<2x1024xf32, #tpu.memory_space<vmem>>, vector<2x1024xf32>,
    return
  }
  func.func @transform_0(%arg0: i32) -> (i32, i32) {
    %c0_i32 = arith.constant 0 : i32
    %c0_i32_0 = arith.constant 0 : i32
    return %arg0, %c0_i32 : i32, i32
  }
  func.func @transform_1(%arg0: i32) -> (i32, i32) {
    %c0_i32 = arith.constant 0 : i32
    %c0_i32_0 = arith.constant 0 : i32
    return %arg0, %c0_i32 : i32, i32
  }
  func.func @transform_2(%arg0: i32) -> (i32, i32) {
    %c0_i32 = arith.constant 0 : i32
    %c0_i32_0 = arith.constant 0 : i32
    return %arg0, %c0_i32 : i32, i32
  }
}

</mosaic_0001>

<llo_original>
// kernel: _fwd.3
$region0: #{_fwd.3}
  #allocation0 [shape = 'u32[]', space=smem, size = 0x4, offset = 0x4, fixed_abs, tag = 'smem constant byte address 0x4 - core index']
  #allocation1 [shape = 'u32[72,128]{1,0:T(1,128)}', space=vmem, size = 0x9000, scoped, tag = 'internal scratch']
  %s0 = inlined_call_operand.vmem [shape: f32[4,1024], index: 0, kind: input, shape index: {}]
  %s1 = inlined_call_operand.vmem [shape: f32[4,1024], index: 1, kind: input, shape index: {}]
  %s2 = inlined_call_operand.vmem [shape: f32[4,1024], index: 2, kind: output, shape index: {}]
  %s3 = sld [smem:[#allocation0]]
  $region18: #{_fwd.3} parent=0
    _
  %s5 = ssub.s32 1, %s3
  %s6 = scalar_select 0, %s5, %s3
  // Predicated region
  $region2: #{_fwd.3} parent=0 // pred_check
    _
  $region3: #{_fwd.3} parent=0 // pred_check_branch
    %8 = sbr.rel (0) target = $region5
  $region4: #{_fwd.3} parent=0 // pred_region
    _
  $region5: #{_fwd.3} parent=0 // pred_fallthru
    _
  // Predicated region
  $region6: #{_fwd.3} parent=0 // pred_check
    _
  $region7: #{_fwd.3} parent=0 // pred_check_branch
    %10 = sbr.rel (0) target = $region9
  $region8: #{_fwd.3} parent=0 // pred_region
    _
  $region9: #{_fwd.3} parent=0 // pred_fallthru
    _
  %v11 = vld [vmem:[%s0] sm:$0xff]
  %v12 = vld [vmem:[%s0 + $0x8] sm:$0xff]
  %v13 = vld [vmem:[%s0 + $0x10] sm:$0xff]
  %v14 = vld [vmem:[%s0 + $0x18] sm:$0xff]
  %v15 = vmul.f32 %v11, 0.0025
  %v16 = vmul.f32 %v12, 0.0025
  %v17 = vmul.f32 %v13, 0.0025
  %v18 = vmul.f32 %v14, 0.0025
  %v19 = vadd.f32 %v15, 2.5e-05
  %v20 = vadd.f32 %v16, 2.5e-05
  %v21 = vadd.f32 %v17, 2.5e-05
  %v22 = vadd.f32 %v18, 2.5e-05
  %v23 = vmax.f32 %v19, 0.0
  %v24 = vmax.f32 %v20, 0.0
  %v25 = vmax.f32 %v21, 0.0
  %v26 = vmax.f32 %v22, 0.0
  %v27 = vrsqrt.pop %v23
  %v28 = vmul.f32 %v27, %v23
  %v29 = vmul.f32 %v28, %v27
  %v30 = vmul.f32 0.5, %v29
  %v31 = vsub.f32 1.5, %v30
  %v32 = vmul.f32 %v27, %v31
  %v33 = vmul.f32 %v23, %v32
  %vm34 = vcmp.eq.f32.partialorder %v23, inf
  %v35 = vsel %vm34, %v23, %v33
  %vm36 = vcmp.eq.f32.partialorder %v23, 0.0
  %v37 = vand.u32 %v23, 2147483648
  %v38 = vsel %vm36, %v37, %v35
  %v39 = vrsqrt.pop %v24
  %v40 = vmul.f32 %v39, %v24
  %v41 = vmul.f32 %v40, %v39
  %v42 = vmul.f32 0.5, %v41
  %v43 = vsub.f32 1.5, %v42
  %v44 = vmul.f32 %v39, %v43
  %v45 = vmul.f32 %v24, %v44
  %vm46 = vcmp.eq.f32.partialorder %v24, inf
  %v47 = vsel %vm46, %v24, %v45
  %vm48 = vcmp.eq.f32.partialorder %v24, 0.0
  %v49 = vand.u32 %v24, 2147483648
  %v50 = vsel %vm48, %v49, %v47
  %v51 = vrsqrt.pop %v25
  %v52 = vmul.f32 %v51, %v25
  %v53 = vmul.f32 %v52, %v51
  %v54 = vmul.f32 0.5, %v53
  %v55 = vsub.f32 1.5, %v54
  %v56 = vmul.f32 %v51, %v55
  %v57 = vmul.f32 %v25, %v56
  %vm58 = vcmp.eq.f32.partialorder %v25, inf
  %v59 = vsel %vm58, %v25, %v57
  %vm60 = vcmp.eq.f32.partialorder %v25, 0.0
  %v61 = vand.u32 %v25, 2147483648
  %v62 = vsel %vm60, %v61, %v59
  %v63 = vrsqrt.pop %v26
  %v64 = vmul.f32 %v63, %v26
  %v65 = vmul.f32 %v64, %v63
  %v66 = vmul.f32 0.5, %v65
  %v67 = vsub.f32 1.5, %v66
  %v68 = vmul.f32 %v63, %v67
  %v69 = vmul.f32 %v26, %v68
  %vm70 = vcmp.eq.f32.partialorder %v26, inf
  %v71 = vsel %vm70, %v26, %v69
  %vm72 = vcmp.eq.f32.partialorder %v26, 0.0
  %v73 = vand.u32 %v26, 2147483648
  %v74 = vsel %vm72, %v73, %v71
  %v75 = vld [vmem:[%s1] sm:$0xff]
  %v76 = vld [vmem:[%s1 + $0x8] sm:$0xff]
  %v77 = vld [vmem:[%s1 + $0x10] sm:$0xff]
  %v78 = vld [vmem:[%s1 + $0x18] sm:$0xff]
  %v79 = vmul.f32 %v38, %v75
  %v80 = vmul.f32 %v50, %v76
  %v81 = vmul.f32 %v62, %v77
  %v82 = vmul.f32 %v74, %v78
  %v83 = vadd.f32 %v11, %v79
  %v84 = vadd.f32 %v12, %v80
  %v85 = vadd.f32 %v13, %v81
  %v86 = vadd.f32 %v14, %v82
  %87 = vst [vmem:[%s2] sm:$0xff] %v83
  %88 = vst [vmem:[%s2 + $0x8] sm:$0xff] %v84
  %89 = vst [vmem:[%s2 + $0x10] sm:$0xff] %v85
  %90 = vst [vmem:[%s2 + $0x18] sm:$0xff] %v86
  // Predicated region
  $region10: #{_fwd.3} parent=0 // pred_check
    _
  $region11: #{_fwd.3} parent=0 // pred_check_branch
    %92 = sbr.rel (0) target = $region13
  $region12: #{_fwd.3} parent=0 // pred_region
    _
  $region13: #{_fwd.3} parent=0 // pred_fallthru
    _
  // Predicated region
  $region14: #{_fwd.3} parent=0 // pred_check
    _
  $region15: #{_fwd.3} parent=0 // pred_check_branch
    %94 = sbr.rel (0) target = $region17
  $region16: #{_fwd.3} parent=0 // pred_region
    _
  $region17: #{_fwd.3} parent=0 // pred_fallthru
    _

// kernel: _fwd.2
$region0: #{_fwd.2}
  #allocation0 [shape = 'u32[]', space=smem, size = 0x4, offset = 0x4, fixed_abs, tag = 'smem constant byte address 0x4 - core index']
  #allocation1 [shape = 'u32[72,128]{1,0:T(1,128)}', space=vmem, size = 0x9000, scoped, tag = 'internal scratch']
  %s0 = inlined_call_operand.vmem [shape: f32[2,1024], index: 0, kind: input, shape index: {}]
  %s1 = inlined_call_operand.vmem [shape: f32[2,1024], index: 1, kind: input, shape index: {}]
  %s2 = inlined_call_operand.vmem [shape: f32[2,1024], index: 2, kind: output, shape index: {}]
  %s3 = sld [smem:[#allocation0]]
  $region18: #{_fwd.2} parent=0
    _
  %s5 = ssub.s32 1, %s3
  %s6 = scalar_select 0, %s5, %s3
  // Predicated region
  $region2: #{_fwd.2} parent=0 // pred_check
    _
  $region3: #{_fwd.2} parent=0 // pred_check_branch
    %8 = sbr.rel (0) target = $region5
  $region4: #{_fwd.2} parent=0 // pred_region
    _
  $region5: #{_fwd.2} parent=0 // pred_fallthru
    _
  // Predicated region
  $region6: #{_fwd.2} parent=0 // pred_check
    _
  $region7: #{_fwd.2} parent=0 // pred_check_branch
    %10 = sbr.rel (0) target = $region9
  $region8: #{_fwd.2} parent=0 // pred_region
    _
  $region9: #{_fwd.2} parent=0 // pred_fallthru
    _
  %v11 = vld [vmem:[%s0] sm:$0xff]
  %v12 = vld [vmem:[%s0 + $0x8] sm:$0xff]
  %v13 = vmul.f32 %v11, 0.01
  %v14 = vmul.f32 %v12, 0.01
  %v15 = vadd.f32 %v13, 0.0001
  %v16 = vadd.f32 %v14, 0.0001
  %v17 = vmax.f32 %v15, 0.0
  %v18 = vmax.f32 %v16, 0.0
  %v19 = vrsqrt.pop %v17
  %v20 = vmul.f32 %v19, %v17
  %v21 = vmul.f32 %v20, %v19
  %v22 = vmul.f32 0.5, %v21
  %v23 = vsub.f32 1.5, %v22
  %v24 = vmul.f32 %v19, %v23
  %v25 = vmul.f32 %v17, %v24
  %vm26 = vcmp.eq.f32.partialorder %v17, inf
  %v27 = vsel %vm26, %v17, %v25
  %vm28 = vcmp.eq.f32.partialorder %v17, 0.0
  %v29 = vand.u32 %v17, 2147483648
  %v30 = vsel %vm28, %v29, %v27
  %v31 = vrsqrt.pop %v18
  %v32 = vmul.f32 %v31, %v18
  %v33 = vmul.f32 %v32, %v31
  %v34 = vmul.f32 0.5, %v33
  %v35 = vsub.f32 1.5, %v34
  %v36 = vmul.f32 %v31, %v35
  %v37 = vmul.f32 %v18, %v36
  %vm38 = vcmp.eq.f32.partialorder %v18, inf
  %v39 = vsel %vm38, %v18, %v37
  %vm40 = vcmp.eq.f32.partialorder %v18, 0.0
  %v41 = vand.u32 %v18, 2147483648
  %v42 = vsel %vm40, %v41, %v39
  %v43 = vld [vmem:[%s1] sm:$0xff]
  %v44 = vld [vmem:[%s1 + $0x8] sm:$0xff]
  %v45 = vmul.f32 %v30, %v43
  %v46 = vmul.f32 %v42, %v44
  %v47 = vadd.f32 %v11, %v45
  %v48 = vadd.f32 %v12, %v46
  %49 = vst [vmem:[%s2] sm:$0xff] %v47
  %50 = vst [vmem:[%s2 + $0x8] sm:$0xff] %v48
  // Predicated region
  $region10: #{_fwd.2} parent=0 // pred_check
    _
  $region11: #{_fwd.2} parent=0 // pred_check_branch
    %52 = sbr.rel (0) target = $region13
  $region12: #{_fwd.2} parent=0 // pred_region
    _
  $region13: #{_fwd.2} parent=0 // pred_fallthru
    _
  // Predicated region
  $region14: #{_fwd.2} parent=0 // pred_check
    _
  $region15: #{_fwd.2} parent=0 // pred_check_branch
    %54 = sbr.rel (0) target = $region17
  $region16: #{_fwd.2} parent=0 // pred_region
    _
  $region17: #{_fwd.2} parent=0 // pred_fallthru
    _

</llo_original>
